<compile_context>
chip_gen: v6e
topology: v6e:2x2x1
jax: 0.10.0
libtpu: 0.0.40
codegen_flags: <defaults>
</compile_context>

<pallas_src>
import jax
import jax.numpy as jnp
import numpy as np
from jax.experimental import pallas as pl
from jax.experimental.pallas import tpu as pltpu


def _round_up(n, m):
    return ((n + m - 1) // m) * m


def _pack_slab(entries, lanes):
    """Pack (name, 2-D array) entries into one (rows, lanes) f32 slab.

    Each entry's rows are padded to a multiple of 8 so every in-kernel slice
    starts sublane-aligned.  Returns (slab, {name: (row_offset, (r, c))}).
    """
    segs, blocks, off = {}, [], 0
    for name, a in entries:
        a = jnp.asarray(a, jnp.float32)
        r, c = a.shape
        r_pad = _round_up(r, 8)
        blocks.append(jnp.pad(a, ((0, r_pad - r), (0, lanes - c))))
        segs[name] = (off, (r, c))
        off += r_pad
    return jnp.concatenate(blocks, axis=0), segs


def prepare_pivae(params, B, E):
    """One-time packing of all parameter-derived constants (run on param update)."""
    p = params
    F = p["centers"].shape[1]
    C, D1 = p["w1"].shape
    D2 = p["w2"].shape[1]
    D = p["w3"].shape[1]
    H1 = p["we1"].shape[1]
    H2 = p["we2"].shape[1]
    Z = p["wmu"].shape[1]
    M = B * E
    M_pad = _round_up(max(M, 128), 128)
    dims = dict(B=B, E=E, F=F, C=C, D1=D1, D2=D2, D=D, H1=H1, H2=H2, Z=Z,
                M=M, M_pad=M_pad, F_pad=_round_up(F, 8), B_pad=_round_up(B, 8))

    # assumes alpha > 0 (RBF width); sqrt(alpha) is folded into centers and x
    sqrt_alpha = jnp.sqrt(p["alpha"].astype(jnp.float32)).reshape(())

    # ---- 128-lane weight slab: M-independent, stays O(100 KB) at any B*E ----
    # PHI layers feature-major (weight.T); VAE layers (in,out) with bias row.
    wmu_lv = jnp.concatenate([p["wmu"], p["wlv"]], axis=1)           # (H2, 2Z)
    bmu_lv = jnp.concatenate([p["bmu"], p["blv"]], axis=1)           # (1, 2Z)
    w_entries = [
        ("phi1", p["w1"].T),                                         # (D1, C)
        ("phi2", p["w2"].T),                                         # (D2, D1)
        ("phi3", p["w3"].T),                                         # (D, D2)
        ("beta_w", p["beta_w"]),                                     # (B, D) VAE input
        ("enc1", jnp.concatenate([p["we1"], p["be1"]], axis=0)),     # (D+1, H1)
        ("enc2", jnp.concatenate([p["we2"], p["be2"]], axis=0)),     # (H1+1, H2)
        ("mulv", jnp.concatenate([wmu_lv, bmu_lv], axis=0)),         # (H2+1, 2Z)
        ("dec1", jnp.concatenate([p["wd1"], p["bd1"]], axis=0)),     # (Z+1, H2)
        ("dec2", jnp.concatenate([p["wd2"], p["bd2"]], axis=0)),     # (H2+1, H1)
        ("dec3", jnp.concatenate([p["wd3"], p["bd3"]], axis=0)),     # (H1+1, D)
    ]
    # TODO(synk): packing assumes every layer's output width fits 128 lanes.
    assert all(a.shape[1] <= 128 for _, a in w_entries)
    wslab, segs_w = _pack_slab(w_entries, 128)

    # ---- M_pad-lane slab: parameter-derived, lane-broadcast constants ----
    m_idx = jnp.arange(M_pad)
    S = (m_idx[None, :] // E == jnp.arange(B)[:, None]).astype(jnp.float32)  # (B, M_pad)
    bb_row = p["beta_b"].T @ S                                       # (1, M_pad)
    beta_w_exp = p["beta_w"].T @ S                                   # (D, M_pad)
    scaled_centers = p["centers"].astype(jnp.float32) * sqrt_alpha   # (C, F)
    m_entries = [
        ("S", S),
        ("bb_row", bb_row),
        ("beta_w_exp", beta_w_exp),
        ("b1b", jnp.broadcast_to(p["b1"].T, (D1, M_pad))),
        ("b2b", jnp.broadcast_to(p["b2"].T, (D2, M_pad))),
        ("b3b", jnp.broadcast_to(p["b3"].T, (D, M_pad))),
    ] + [(f"cb{f}", jnp.broadcast_to(scaled_centers[:, f:f + 1], (C, M_pad)))
         for f in range(F)]
    mslab, segs_m = _pack_slab(m_entries, M_pad)

    prepared = dict(wslab=wslab, mslab=mslab, sqrt_alpha=sqrt_alpha)
    meta = dict(dims=dims, segs_w=segs_w, segs_m=segs_m,
                wslab_shape=tuple(wslab.shape), mslab_shape=tuple(mslab.shape))
    return prepared, meta


def make_pivae_forward(meta):
    """Build the jitted forward given static packing metadata."""
    dims, segs_w, segs_m = meta["dims"], meta["segs_w"], meta["segs_m"]
    B, E, F, C = dims["B"], dims["E"], dims["F"], dims["C"]
    D1, D2, D = dims["D1"], dims["D2"], dims["D"]
    H1, H2, Z = dims["H1"], dims["H2"], dims["Z"]
    M, M_pad = dims["M"], dims["M_pad"]
    F_pad, B_pad = dims["F_pad"], dims["B_pad"]
    out_lanes = max(M_pad, _round_up(2 * Z, 128))   # never couple 2Z to M padding
    out_rows = 8 + B_pad                            # rows 0/1: y1/y2 ; 8:8+B: mu|logvar
    data_rows = F_pad + B_pad

    def kernel(w_ref, m_ref, d_ref, o_ref):
        def wseg(name):
            off, (r, c) = segs_w[name]
            return w_ref[off:off + r, 0:c]

        def mseg(name):
            off, (r, c) = segs_m[name]
            return m_ref[off:off + r, 0:c]

        # ---- data (feature-major: M on lanes, x already scaled by sqrt(alpha)) ----
        x_fm = d_ref[0:F, :]                             # (F, M_pad)
        eps_v = d_ref[F_pad:F_pad + B, 0:Z]              # (B, Z)

        # ---- PHI: RBF layer — pre-broadcast centers, sign folded into accum ----
        ndist2 = jnp.zeros((C, M_pad), jnp.float32)
        for f in range(F):                               # F tiny, static unroll
            diff = x_fm[f:f + 1, :] - mseg(f"cb{f}")     # (C, M_pad), no lane bcast
            ndist2 = ndist2 - diff * diff
        rbf = jnp.exp(ndist2)                            # (C, M_pad)

        # ---- PHI: tanh MLP, feature-major, pre-broadcast biases ----
        h1 = jnp.tanh(jnp.dot(wseg("phi1"), rbf,
                              preferred_element_type=jnp.float32) + mseg("b1b"))
        h2 = jnp.tanh(jnp.dot(wseg("phi2"), h1,
                              preferred_element_type=jnp.float32) + mseg("b2b"))
        phi = jnp.dot(wseg("phi3"), h2,
                      preferred_element_type=jnp.float32) + mseg("b3b")   # (D, M_pad)

        # ---- y1: precomputed beta expansion -> VPU multiply + sublane reduce ----
        bb_row = mseg("bb_row")                          # (1, M_pad)
        y1_row = jnp.sum(mseg("beta_w_exp") * phi,
                         axis=0, keepdims=True) + bb_row

        # ---- VAE over the stacked beta weights (sample-major, tiny) ----
        def vae_layer(name, act, act_fn):
            seg = wseg(name)                             # (in+1, out)
            w, b = seg[:-1, :], seg[-1:, :]
            return act_fn(jnp.dot(act, w, preferred_element_type=jnp.float32) + b)

        relu = lambda v: jnp.maximum(v, 0.0)
        beta_w = wseg("beta_w")                          # (B, D)
        he1 = vae_layer("enc1", beta_w, relu)            # (B, H1)
        he2 = vae_layer("enc2", he1, relu)               # (B, H2)
        mulv = vae_layer("mulv", he2, lambda v: v)       # (B, 2Z) = [mu | logvar]
        mu = mulv[:, 0:Z]
        logvar = mulv[:, Z:2 * Z]
        z = mu + eps_v * jnp.exp(0.5 * logvar)
        hd1 = vae_layer("dec1", z, relu)
        hd2 = vae_layer("dec2", hd1, relu)
        recon = vae_layer("dec3", hd2, lambda v: v)      # (B, D)

        # ---- y2: recon depends on VAE, so keep the masked matmul path ----
        y2_row = jnp.sum(
            jnp.dot(recon, phi, preferred_element_type=jnp.float32) * mseg("S"),
            axis=0, keepdims=True) + bb_row              # (1, M_pad)

        # ---- packed output: one zero-fill + sub-slice writes, single out DMA ----
        o_ref[...] = jnp.zeros_like(o_ref)
        o_ref[0:1, 0:M_pad] = y1_row
        o_ref[1:2, 0:M_pad] = y2_row
        o_ref[8:8 + B, 0:2 * Z] = mulv

    # advisory cost estimate so XLA schedules realistically around this tiny call
    flops = (2 * M_pad * (D1 * C + D2 * D1 + D * D2 + B * D)
             + 2 * M_pad * (C * F + D)
             + 2 * B * (D * H1 + H1 * H2 + H2 * 2 * Z + Z * H2 + H2 * H1 + H1 * D))
    trans = M_pad * (C + D1 + D2) + B * Z
    bytes_acc = 4 * (meta["wslab_shape"][0] * meta["wslab_shape"][1]
                     + meta["mslab_shape"][0] * meta["mslab_shape"][1]
                     + data_rows * M_pad + out_rows * out_lanes)
    cost = pl.CostEstimate(flops=int(flops), transcendentals=int(trans),
                           bytes_accessed=int(bytes_acc))

    vmem = pl.BlockSpec(memory_space=pltpu.MemorySpace.VMEM)
    pallas_fn = pl.pallas_call(
        kernel,
        out_shape=jax.ShapeDtypeStruct((out_rows, out_lanes), jnp.float32),
        in_specs=[vmem, vmem, vmem],
        out_specs=vmem,
        cost_estimate=cost,
    )

    @jax.jit
    def forward(x, eps, wslab, mslab, sqrt_alpha):
        # Per-call wrapper work is now only this tiny relayout + eps placement.
        x_fm = (x.reshape(M, F).astype(jnp.float32) * sqrt_alpha).T   # (F, M)
        data = jnp.zeros((data_rows, M_pad), jnp.float32)
        data = data.at[0:F, 0:M].set(x_fm)
        data = data.at[F_pad:F_pad + B, 0:Z].set(eps.astype(jnp.float32))
        out = pallas_fn(wslab, mslab, data)
        y1 = out[0, :M].reshape(B, E)
        y2 = out[1, :M].reshape(B, E)
        mu = out[8:8 + B, 0:Z]
        logvar = out[8:8 + B, Z:2 * Z]
        return y1, y2, mu, logvar

    return forward


# ----------------------------------------------------------------------------
# Pure-JAX reference (mirrors the PyTorch forward semantics) for validation.
# ----------------------------------------------------------------------------
def pivae_reference(x, p, eps):
    B, E, F = x.shape
    xf = x.reshape(B * E, F)
    c = p["centers"]
    dist2 = (jnp.sum(xf * xf, -1, keepdims=True) + jnp.sum(c * c, -1)[None, :]
             - 2.0 * xf @ c.T)
    rbf = jnp.exp(-p["alpha"][0, 0] * dist2)
    h1 = jnp.tanh(rbf @ p["w1"] + p["b1"])
    h2 = jnp.tanh(h1 @ p["w2"] + p["b2"])
    phi = (h2 @ p["w3"] + p["b3"]).reshape(B, E, -1)

    bw, bb = p["beta_w"], p["beta_b"]
    y1 = jnp.einsum("bed,bd->be", phi, bw) + bb

    he1 = jax.nn.relu(bw @ p["we1"] + p["be1"])
    he2 = jax.nn.relu(he1 @ p["we2"] + p["be2"])
    mu = he2 @ p["wmu"] + p["bmu"]
    logvar = he2 @ p["wlv"] + p["blv"]
    z = mu + eps * jnp.exp(0.5 * logvar)
    hd1 = jax.nn.relu(z @ p["wd1"] + p["bd1"])
    hd2 = jax.nn.relu(hd1 @ p["wd2"] + p["bd2"])
    recon = hd2 @ p["wd3"] + p["bd3"]

    y2 = jnp.einsum("bed,bd->be", phi, recon) + bb
    return y1, y2, mu, logvar


def make_params(key, *, in_features, n_centers, dim1, dim2, out_dims,
                hidden_dim1, hidden_dim2, z_dim, batch_size, alpha=1.0):
    keys = jax.random.split(key, 32)
    i = iter(range(32))

    def lin(k_w, k_b, fan_in, fan_out):
        w = jax.random.normal(keys[k_w], (fan_in, fan_out), jnp.float32) * (1.0 / np.sqrt(fan_in))
        b = jax.random.normal(keys[k_b], (1, fan_out), jnp.float32) * 0.01
        return w, b

    p = {}
    p["centers"] = jax.random.normal(keys[next(i)], (n_centers, in_features), jnp.float32)
    p["alpha"] = jnp.full((1, 1), alpha, jnp.float32)
    p["w1"], p["b1"] = lin(next(i), next(i), n_centers, dim1)
    p["w2"], p["b2"] = lin(next(i), next(i), dim1, dim2)
    p["w3"], p["b3"] = lin(next(i), next(i), dim2, out_dims)
    # stacked per-sample beta heads (batch_size x Linear(out_dims, 1))
    p["beta_w"] = jax.random.normal(keys[next(i)], (batch_size, out_dims), jnp.float32) * (1.0 / np.sqrt(out_dims))
    p["beta_b"] = jax.random.normal(keys[next(i)], (batch_size, 1), jnp.float32) * 0.01
    # VAE encoder / decoder
    p["we1"], p["be1"] = lin(next(i), next(i), out_dims, hidden_dim1)
    p["we2"], p["be2"] = lin(next(i), next(i), hidden_dim1, hidden_dim2)
    p["wmu"], p["bmu"] = lin(next(i), next(i), hidden_dim2, z_dim)
    p["wlv"], p["blv"] = lin(next(i), next(i), hidden_dim2, z_dim)
    p["wd1"], p["bd1"] = lin(next(i), next(i), z_dim, hidden_dim2)
    p["wd2"], p["bd2"] = lin(next(i), next(i), hidden_dim2, hidden_dim1)
    p["wd3"], p["bd3"] = lin(next(i), next(i), hidden_dim1, out_dims)
    return p


if __name__ == "__main__":
    # Small shapes consistent with the module's forward pass (B*E = 128 lanes).
    B = 8        # batch_size (number of beta heads == number of samples)
    E = 16       # n_evals
    F = 2        # in_features
    C = 8        # n_centers
    D1, D2 = 16, 16          # PHI hidden dims
    D = 32                   # out_dims
    H1, H2, Z = 32, 16, 8    # VAE hidden dims / latent dim

    key = jax.random.PRNGKey(0)
    k_x, k_p, k_eps = jax.random.split(key, 3)

    x = jax.random.normal(k_x, (B, E, F), jnp.float32)
    params = make_params(k_p, in_features=F, n_centers=C, dim1=D1, dim2=D2,
                         out_dims=D, hidden_dim1=H1, hidden_dim2=H2,
                         z_dim=Z, batch_size=B, alpha=0.8)
    eps = jax.random.normal(k_eps, (B, Z), jnp.float32)   # reparameterization noise

    # One-time parameter packing (hoisted out of the per-call path).
    prepared, meta = prepare_pivae(params, B=B, E=E)
    pivae_forward = make_pivae_forward(meta)

    y1, y2, mu, logvar = jax.block_until_ready(
        pivae_forward(x, eps, prepared["wslab"], prepared["mslab"],
                      prepared["sqrt_alpha"]))

    # sanity check against a pure-JAX reference of the same math
    r1, r2, rmu, rlv = pivae_reference(x, params, eps)
    np.testing.assert_allclose(np.asarray(y1), np.asarray(r1), rtol=2e-4, atol=2e-4)
    np.testing.assert_allclose(np.asarray(y2), np.asarray(r2), rtol=2e-4, atol=2e-4)
    np.testing.assert_allclose(np.asarray(mu), np.asarray(rmu), rtol=2e-4, atol=2e-4)
    np.testing.assert_allclose(np.asarray(logvar), np.asarray(rlv), rtol=2e-4, atol=2e-4)

    assert y1.shape == (B, E) and y2.shape == (B, E)
    assert mu.shape == (B, Z) and logvar.shape == (B, Z)
    print("KERNEL_OK")
</pallas_src>

<mosaic_0001>
module attributes {stable_mosaic.version = 11 : i64} {
  func.func @kernel(%arg0: memref<256x128xf32, #tpu.memory_space<vmem>>, %arg1: memref<128x128xf32, #tpu.memory_space<vmem>>, %arg2: memref<16x128xf32, #tpu.memory_space<vmem>>, %arg3: memref<16x128xf32, #tpu.memory_space<vmem>>) attributes {dimension_semantics = [], scalar_prefetch = 0 : i64, scratch_operands = 0 : i64, tpu.core_type = #tpu.core_type<tc>} {
    %c0 = arith.constant 0 : index
    %c0_0 = arith.constant 0 : index
    %0 = vector.load %arg2[%c0, %c0_0] : memref<16x128xf32, #tpu.memory_space<vmem>>, vector<2x128xf32>
    %c8 = arith.constant 8 : index
    %c0_1 = arith.constant 0 : index
    %1 = vector.load %arg2[%c8, %c0_1] : memref<16x128xf32, #tpu.memory_space<vmem>>, vector<8x8xf32>
    %cst = arith.constant 0.000000e+00 : f32
    %2 = vector.broadcast %cst : f32 to vector<8x128xf32>
    %3 = vector.extract_strided_slice %0 {offsets = [0, 0], sizes = [1, 128], strides = [1, 1]} : vector<2x128xf32> to vector<1x128xf32>
    %c112 = arith.constant 112 : index
    %c0_2 = arith.constant 0 : index
    %4 = vector.load %arg1[%c112, %c0_2] : memref<128x128xf32, #tpu.memory_space<vmem>>, vector<8x128xf32>
    %5 = vector.broadcast %3 : vector<1x128xf32> to vector<8x128xf32>
    %6 = arith.subf %5, %4 : vector<8x128xf32>
    %7 = arith.mulf %6, %6 : vector<8x128xf32>
    %8 = arith.subf %2, %7 : vector<8x128xf32>
    %9 = vector.extract_strided_slice %0 {offsets = [1, 0], sizes = [1, 128], strides = [1, 1]} : vector<2x128xf32> to vector<1x128xf32>
    %c120 = arith.constant 120 : index
    %c0_3 = arith.constant 0 : index
    %10 = vector.load %arg1[%c120, %c0_3] : memref<128x128xf32, #tpu.memory_space<vmem>>, vector<8x128xf32>
    %11 = vector.broadcast %9 : vector<1x128xf32> to vector<8x128xf32>
    %12 = arith.subf %11, %10 : vector<8x128xf32>
    %13 = arith.mulf %12, %12 : vector<8x128xf32>
    %14 = arith.subf %8, %13 : vector<8x128xf32>
    %15 = math.exp %14 : vector<8x128xf32>
    %c0_4 = arith.constant 0 : index
    %c0_5 = arith.constant 0 : index
    %16 = vector.load %arg0[%c0_4, %c0_5] : memref<256x128xf32, #tpu.memory_space<vmem>>, vector<16x8xf32>
    %cst_6 = arith.constant dense<0.000000e+00> : vector<16x128xf32>
    %17 = tpu.matmul %16, %15, %cst_6 {dimension_numbers = #tpu.dot_dimension_numbers<[1], [0], [0], [1], [0, 0, 1, 1], [], []>} : vector<16x8xf32>, vector<8x128xf32>, vector<16x128xf32> -> vector<16x128xf32>
    %c48 = arith.constant 48 : index
    %c0_7 = arith.constant 0 : index
    %18 = vector.load %arg1[%c48, %c0_7] : memref<128x128xf32, #tpu.memory_space<vmem>>, vector<16x128xf32>
    %19 = arith.addf %17, %18 : vector<16x128xf32>
    %20 = math.tanh %19 : vector<16x128xf32>
    %c16 = arith.constant 16 : index
    %c0_8 = arith.constant 0 : index
    %21 = vector.load %arg0[%c16, %c0_8] : memref<256x128xf32, #tpu.memory_space<vmem>>, vector<16x16xf32>
    %cst_9 = arith.constant dense<0.000000e+00> : vector<16x128xf32>
    %22 = tpu.matmul %21, %20, %cst_9 {dimension_numbers = #tpu.dot_dimension_numbers<[1], [0], [0], [1], [0, 0, 1, 1], [], []>} : vector<16x16xf32>, vector<16x128xf32>, vector<16x128xf32> -> vector<16x128xf32>
    %c64 = arith.constant 64 : index
    %c0_10 = arith.constant 0 : index
    %23 = vector.load %arg1[%c64, %c0_10] : memref<128x128xf32, #tpu.memory_space<vmem>>, vector<16x128xf32>
    %24 = arith.addf %22, %23 : vector<16x128xf32>
    %25 = math.tanh %24 : vector<16x128xf32>
    %c32 = arith.constant 32 : index
    %c0_11 = arith.constant 0 : index
    %26 = vector.load %arg0[%c32, %c0_11] : memref<256x128xf32, #tpu.memory_space<vmem>>, vector<32x16xf32>
    %cst_12 = arith.constant dense<0.000000e+00> : vector<32x128xf32>
    %27 = tpu.matmul %26, %25, %cst_12 {dimension_numbers = #tpu.dot_dimension_numbers<[1], [0], [0], [1], [0, 0, 1, 1], [], []>} : vector<32x16xf32>, vector<16x128xf32>, vector<32x128xf32> -> vector<32x128xf32>
    %c80 = arith.constant 80 : index
    %c0_13 = arith.constant 0 : index
    %28 = vector.load %arg1[%c80, %c0_13] : memref<128x128xf32, #tpu.memory_space<vmem>>, vector<32x128xf32>
    %29 = arith.addf %27, %28 : vector<32x128xf32>
    %c8_14 = arith.constant 8 : index
    %c0_15 = arith.constant 0 : index
    %30 = vector.load %arg1[%c8_14, %c0_15] : memref<128x128xf32, #tpu.memory_space<vmem>>, vector<1x128xf32>
    %c16_16 = arith.constant 16 : index
    %c0_17 = arith.constant 0 : index
    %31 = vector.load %arg1[%c16_16, %c0_17] : memref<128x128xf32, #tpu.memory_space<vmem>>, vector<32x128xf32>
    %32 = arith.mulf %31, %29 : vector<32x128xf32>
    %cst_18 = arith.constant dense<0.000000e+00> : vector<128xf32>
    %33 = vector.multi_reduction <add>, %32, %cst_18 [0] : vector<32x128xf32> to vector<128xf32>
    %34 = vector.shape_cast %33 : vector<128xf32> to vector<1x128xf32>
    %35 = arith.addf %34, %30 : vector<1x128xf32>
    %c64_19 = arith.constant 64 : index
    %c0_20 = arith.constant 0 : index
    %36 = vector.load %arg0[%c64_19, %c0_20] : memref<256x128xf32, #tpu.memory_space<vmem>>, vector<8x32xf32>
    %c72 = arith.constant 72 : index
    %c0_21 = arith.constant 0 : index
    %37 = vector.load %arg0[%c72, %c0_21] : memref<256x128xf32, #tpu.memory_space<vmem>>, vector<33x32xf32>
    %38 = vector.extract_strided_slice %37 {offsets = [0, 0], sizes = [32, 32], strides = [1, 1]} : vector<33x32xf32> to vector<32x32xf32>
    %39 = vector.extract_strided_slice %37 {offsets = [32, 0], sizes = [1, 32], strides = [1, 1]} : vector<33x32xf32> to vector<1x32xf32>
    %cst_22 = arith.constant dense<0.000000e+00> : vector<8x32xf32>
    %40 = tpu.matmul %36, %38, %cst_22 {dimension_numbers = #tpu.dot_dimension_numbers<[1], [0], [0], [1], [0, 0, 1, 1], [], []>} : vector<8x32xf32>, vector<32x32xf32>, vector<8x32xf32> -> vector<8x32xf32>
    %41 = vector.broadcast %39 : vector<1x32xf32> to vector<8x32xf32>
    %42 = arith.addf %40, %41 : vector<8x32xf32>
    %cst_23 = arith.constant 0.000000e+00 : f32
    %43 = vector.broadcast %cst_23 : f32 to vector<8x32xf32>
    %44 = arith.maximumf %42, %43 : vector<8x32xf32>
    %c112_24 = arith.constant 112 : index
    %c0_25 = arith.constant 0 : index
    %45 = vector.load %arg0[%c112_24, %c0_25] : memref<256x128xf32, #tpu.memory_space<vmem>>, vector<33x16xf32>
    %46 = vector.extract_strided_slice %45 {offsets = [0, 0], sizes = [32, 16], strides = [1, 1]} : vector<33x16xf32> to vector<32x16xf32>
    %47 = vector.extract_strided_slice %45 {offsets = [32, 0], sizes = [1, 16], strides = [1, 1]} : vector<33x16xf32> to vector<1x16xf32>
    %cst_26 = arith.constant dense<0.000000e+00> : vector<8x16xf32>
    %48 = tpu.matmul %44, %46, %cst_26 {dimension_numbers = #tpu.dot_dimension_numbers<[1], [0], [0], [1], [0, 0, 1, 1], [], []>} : vector<8x32xf32>, vector<32x16xf32>, vector<8x16xf32> -> vector<8x16xf32>
    %49 = vector.broadcast %47 : vector<1x16xf32> to vector<8x16xf32>
    %50 = arith.addf %48, %49 : vector<8x16xf32>
    %cst_27 = arith.constant 0.000000e+00 : f32
    %51 = vector.broadcast %cst_27 : f32 to vector<8x16xf32>
    %52 = arith.maximumf %50, %51 : vector<8x16xf32>
    %c152 = arith.constant 152 : index
    %c0_28 = arith.constant 0 : index
    %53 = vector.load %arg0[%c152, %c0_28] : memref<256x128xf32, #tpu.memory_space<vmem>>, vector<17x16xf32>
    %54 = vector.extract_strided_slice %53 {offsets = [0, 0], sizes = [16, 16], strides = [1, 1]} : vector<17x16xf32> to vector<16x16xf32>
    %55 = vector.extract_strided_slice %53 {offsets = [16, 0], sizes = [1, 16], strides = [1, 1]} : vector<17x16xf32> to vector<1x16xf32>
    %cst_29 = arith.constant dense<0.000000e+00> : vector<8x16xf32>
    %56 = tpu.matmul %52, %54, %cst_29 {dimension_numbers = #tpu.dot_dimension_numbers<[1], [0], [0], [1], [0, 0, 1, 1], [], []>} : vector<8x16xf32>, vector<16x16xf32>, vector<8x16xf32> -> vector<8x16xf32>
    %57 = vector.broadcast %55 : vector<1x16xf32> to vector<8x16xf32>
    %58 = arith.addf %56, %57 : vector<8x16xf32>
    %59 = vector.extract_strided_slice %58 {offsets = [0, 0], sizes = [8, 8], strides = [1, 1]} : vector<8x16xf32> to vector<8x8xf32>
    %60 = vector.extract_strided_slice %58 {offsets = [0, 8], sizes = [8, 8], strides = [1, 1]} : vector<8x16xf32> to vector<8x8xf32>
    %cst_30 = arith.constant 5.000000e-01 : f32
    %61 = vector.broadcast %cst_30 : f32 to vector<8x8xf32>
    %62 = arith.mulf %61, %60 : vector<8x8xf32>
    %63 = math.exp %62 : vector<8x8xf32>
    %64 = arith.mulf %1, %63 : vector<8x8xf32>
    %65 = arith.addf %59, %64 : vector<8x8xf32>
    %c176 = arith.constant 176 : index
    %c0_31 = arith.constant 0 : index
    %66 = vector.load %arg0[%c176, %c0_31] : memref<256x128xf32, #tpu.memory_space<vmem>>, vector<9x16xf32>
    %67 = vector.extract_strided_slice %66 {offsets = [0, 0], sizes = [8, 16], strides = [1, 1]} : vector<9x16xf32> to vector<8x16xf32>
    %68 = vector.extract_strided_slice %66 {offsets = [8, 0], sizes = [1, 16], strides = [1, 1]} : vector<9x16xf32> to vector<1x16xf32>
    %cst_32 = arith.constant dense<0.000000e+00> : vector<8x16xf32>
    %69 = tpu.matmul %65, %67, %cst_32 {dimension_numbers = #tpu.dot_dimension_numbers<[1], [0], [0], [1], [0, 0, 1, 1], [], []>} : vector<8x8xf32>, vector<8x16xf32>, vector<8x16xf32> -> vector<8x16xf32>
    %70 = vector.broadcast %68 : vector<1x16xf32> to vector<8x16xf32>
    %71 = arith.addf %69, %70 : vector<8x16xf32>
    %cst_33 = arith.constant 0.000000e+00 : f32
    %72 = vector.broadcast %cst_33 : f32 to vector<8x16xf32>
    %73 = arith.maximumf %71, %72 : vector<8x16xf32>
    %c192 = arith.constant 192 : index
    %c0_34 = arith.constant 0 : index
    %74 = vector.load %arg0[%c192, %c0_34] : memref<256x128xf32, #tpu.memory_space<vmem>>, vector<17x32xf32>
    %75 = vector.extract_strided_slice %74 {offsets = [0, 0], sizes = [16, 32], strides = [1, 1]} : vector<17x32xf32> to vector<16x32xf32>
    %76 = vector.extract_strided_slice %74 {offsets = [16, 0], sizes = [1, 32], strides = [1, 1]} : vector<17x32xf32> to vector<1x32xf32>
    %cst_35 = arith.constant dense<0.000000e+00> : vector<8x32xf32>
    %77 = tpu.matmul %73, %75, %cst_35 {dimension_numbers = #tpu.dot_dimension_numbers<[1], [0], [0], [1], [0, 0, 1, 1], [], []>} : vector<8x16xf32>, vector<16x32xf32>, vector<8x32xf32> -> vector<8x32xf32>
    %78 = vector.broadcast %76 : vector<1x32xf32> to vector<8x32xf32>
    %79 = arith.addf %77, %78 : vector<8x32xf32>
    %cst_36 = arith.constant 0.000000e+00 : f32
    %80 = vector.broadcast %cst_36 : f32 to vector<8x32xf32>
    %81 = arith.maximumf %79, %80 : vector<8x32xf32>
    %c216 = arith.constant 216 : index
    %c0_37 = arith.constant 0 : index
    %82 = vector.load %arg0[%c216, %c0_37] : memref<256x128xf32, #tpu.memory_space<vmem>>, vector<33x32xf32>
    %83 = vector.extract_strided_slice %82 {offsets = [0, 0], sizes = [32, 32], strides = [1, 1]} : vector<33x32xf32> to vector<32x32xf32>
    %84 = vector.extract_strided_slice %82 {offsets = [32, 0], sizes = [1, 32], strides = [1, 1]} : vector<33x32xf32> to vector<1x32xf32>
    %cst_38 = arith.constant dense<0.000000e+00> : vector<8x32xf32>
    %85 = tpu.matmul %81, %83, %cst_38 {dimension_numbers = #tpu.dot_dimension_numbers<[1], [0], [0], [1], [0, 0, 1, 1], [], []>} : vector<8x32xf32>, vector<32x32xf32>, vector<8x32xf32> -> vector<8x32xf32>
    %86 = vector.broadcast %84 : vector<1x32xf32> to vector<8x32xf32>
    %87 = arith.addf %85, %86 : vector<8x32xf32>
    %cst_39 = arith.constant dense<0.000000e+00> : vector<8x128xf32>
    %88 = tpu.matmul %87, %29, %cst_39 {dimension_numbers = #tpu.dot_dimension_numbers<[1], [0], [0], [1], [0, 0, 1, 1], [], []>} : vector<8x32xf32>, vector<32x128xf32>, vector<8x128xf32> -> vector<8x128xf32>
    %c0_40 = arith.constant 0 : index
    %c0_41 = arith.constant 0 : index
    %89 = vector.load %arg1[%c0_40, %c0_41] : memref<128x128xf32, #tpu.memory_space<vmem>>, vector<8x128xf32>
    %90 = arith.mulf %88, %89 : vector<8x128xf32>
    %cst_42 = arith.constant dense<0.000000e+00> : vector<128xf32>
    %91 = vector.multi_reduction <add>, %90, %cst_42 [0] : vector<8x128xf32> to vector<128xf32>
    %92 = vector.shape_cast %91 : vector<128xf32> to vector<1x128xf32>
    %93 = arith.addf %92, %30 : vector<1x128xf32>
    %cst_43 = arith.constant 0.000000e+00 : f32
    %94 = vector.broadcast %cst_43 : f32 to vector<16x128xf32>
    %c0_44 = arith.constant 0 : index
    %c0_45 = arith.constant 0 : index
    %95 = vector.load %arg3[%c0_44, %c0_45] : memref<16x128xf32, #tpu.memory_space<vmem>>, vector<16x128xf32>
    tpu.vector_store %arg3[%c0_44, %c0_45], %94 {strides = array<i32>} : memref<16x128xf32, #tpu.memory_space<vmem>>, vector<16x128xf32>,
    %c0_46 = arith.constant 0 : index
    %c0_47 = arith.constant 0 : index
    %96 = vector.load %arg3[%c0_46, %c0_47] : memref<16x128xf32, #tpu.memory_space<vmem>>, vector<1x128xf32>
    tpu.vector_store %arg3[%c0_46, %c0_47], %35 {strides = array<i32>} : memref<16x128xf32, #tpu.memory_space<vmem>>, vector<1x128xf32>,
    %c1 = arith.constant 1 : index
    %c0_48 = arith.constant 0 : index
    %97 = vector.load %arg3[%c1, %c0_48] : memref<16x128xf32, #tpu.memory_space<vmem>>, vector<1x128xf32>
    tpu.vector_store %arg3[%c1, %c0_48], %93 {strides = array<i32>} : memref<16x128xf32, #tpu.memory_space<vmem>>, vector<1x128xf32>,
    %c8_49 = arith.constant 8 : index
    %c0_50 = arith.constant 0 : index
    %98 = vector.load %arg3[%c8_49, %c0_50] : memref<16x128xf32, #tpu.memory_space<vmem>>, vector<8x16xf32>
    tpu.vector_store %arg3[%c8_49, %c0_50], %58 {strides = array<i32>} : memref<16x128xf32, #tpu.memory_space<vmem>>, vector<8x16xf32>,
    return
  }
}

</mosaic_0001>

<llo_original>
// kernel: squeeze.3
$region0: #{squeeze.3}
  %s0 = inlined_call_operand.vmem [shape: f32[128], index: 0, kind: input, shape index: {}]
  %s1 = inlined_call_operand.hbm [shape: f32[8,16], index: 1, kind: output, shape index: {}]
  $region1: #{squeeze.3} parent=0
    #allocation0 [shape = 'u8[4096]{0}', space=vmem, size = 0x1000, scoped, tag = 'operand span for operand 1']
    #allocation1 [shape = 's32[1]{0}', space=sflag, size = 0x4, scoped, tag = 'scoped memory for squeeze.3']
    #allocation2 [shape = 'u8[4096]{0}', space=vmem, size = 0x1000, scoped, tag = 'scoped mem for input reshape']
    %2 = vsyncpa [#allocation1], 0
    %s4 = sshll.u32 1, 1
    %s5 = ssub.s32 %s4, 1
    %v6 = vld [vmem:[%s0] sm:%s5]
    %7 = vst [vmem:[#allocation2] sm:%s5] %v6
    %v8 = vld [vmem:[#allocation2] sm:$0x1]
    %vm9 = vcmask 130048
    %10 = vst.msk [vmem:[#allocation0] sm:$0x1] %vm9, %v8
    %v11 = vld [vmem:[#allocation2] sm:$0x1]
    %12 = vrot.lane.b32.xlu0 %v11, 112
    %v13 = vpop.permute.xlu0 %12
    %vm14 = vcmask 130048
    %s15 = scalar_lea.vmem [#allocation0], 1
    %16 = vst.msk [vmem:[%s15] sm:$0x1] %vm14, %v13
    %v17 = vld [vmem:[#allocation2] sm:$0x1]
    %18 = vrot.lane.b32.xlu0 %v17, 96
    %v19 = vpop.permute.xlu0 %18
    %vm20 = vcmask 130048
    %s21 = scalar_lea.vmem [#allocation0], 2
    %22 = vst.msk [vmem:[%s21] sm:$0x1] %vm20, %v19
    %v23 = vld [vmem:[#allocation2] sm:$0x1]
    %24 = vrot.lane.b32.xlu0 %v23, 80
    %v25 = vpop.permute.xlu0 %24
    %vm26 = vcmask 130048
    %s27 = scalar_lea.vmem [#allocation0], 3
    %28 = vst.msk [vmem:[%s27] sm:$0x1] %vm26, %v25
    %v29 = vld [vmem:[#allocation2] sm:$0x1]
    %30 = vrot.lane.b32.xlu0 %v29, 64
    %v31 = vpop.permute.xlu0 %30
    %vm32 = vcmask 130048
    %s33 = scalar_lea.vmem [#allocation0], 4
    %34 = vst.msk [vmem:[%s33] sm:$0x1] %vm32, %v31
    %v35 = vld [vmem:[#allocation2] sm:$0x1]
    %36 = vrot.lane.b32.xlu0 %v35, 48
    %v37 = vpop.permute.xlu0 %36
    %vm38 = vcmask 130048
    %s39 = scalar_lea.vmem [#allocation0], 5
    %40 = vst.msk [vmem:[%s39] sm:$0x1] %vm38, %v37
    %v41 = vld [vmem:[#allocation2] sm:$0x1]
    %42 = vrot.lane.b32.xlu0 %v41, 32
    %v43 = vpop.permute.xlu0 %42
    %vm44 = vcmask 130048
    %s45 = scalar_lea.vmem [#allocation0], 6
    %46 = vst.msk [vmem:[%s45] sm:$0x1] %vm44, %v43
    %v47 = vld [vmem:[#allocation2] sm:$0x1]
    %48 = vrot.lane.b32.xlu0 %v47, 16
    %v49 = vpop.permute.xlu0 %48
    %vm50 = vcmask 130048
    %s51 = scalar_lea.vmem [#allocation0], 7
    %52 = vst.msk [vmem:[%s51] sm:$0x1] %vm50, %v49
    %s54 = ssub.s32 128, 128
    %55 = vsyncadd [#allocation1], %s54
    %s57 = sshll.u32 [#allocation0], 4
    %s58 = int_to_ptr.vmem [resolvable:$true] %s57
    %60 = dma.vmem_to_hbm [thread:$0]  %s58, 128, %s1, [#allocation1]
    %61 = dma.done [#allocation1], 128
    %62 = vsyncpa [#allocation1], 1

// kernel: forward.1
$region0: #{forward.1}
  #allocation0 [shape = 'u32[]', space=smem, size = 0x4, offset = 0x4, fixed_abs, tag = 'smem constant byte address 0x4 - core index']
  #allocation1 [shape = 'u32[144,128]{1,0:T(1,128)}', space=vmem, size = 0x12000, scoped, tag = 'internal scratch']
  %s0 = inlined_call_operand.hbm [shape: f32[256,128], index: 0, kind: input, shape index: {}]
  %s1 = inlined_call_operand.vmem [shape: f32[128,128], index: 1, kind: input, shape index: {}]
  %s2 = inlined_call_operand.vmem [shape: f32[16,128], index: 2, kind: input, shape index: {}]
  %s3 = inlined_call_operand.vmem [shape: f32[16,128], index: 3, kind: output, shape index: {}]
  %s4 = sld [smem:[#allocation0]]
  $region26: #{forward.1} parent=0
    _
  %s6 = ssub.s32 1, %s4
  %s7 = scalar_select 0, %s6, %s4
  $region1: #{forward.1} parent=0
    #allocation2 [shape = 'u8[131072]{0}', space=vmem, size = 0x20000, scoped, tag = 'input window, operand 0, single buffered']
    #allocation3 [shape = 's32[1]{0}', space=sflag, size = 0x4, scoped, tag = 'scoped memory for forward.1']
    %8 = vsyncpa [#allocation3], 0
    // Predicated region
    $region2: #{forward.1} parent=1 // pred_check
      _
    $region3: #{forward.1} parent=1 // pred_check_branch
      %10 = sbr.rel (0) target = $region5
    $region4: #{forward.1} parent=1 // pred_region
      %s12 = ssub.s32 4096, 4096
      %13 = vsyncadd [#allocation3], %s12
      %s14 = sshll.u32 [#allocation2], 4
      %s15 = int_to_ptr.vmem [resolvable:$true] %s14
      %20 = dma.hbm_to_vmem [thread:$0]  %s0, 4096, %s15, [#allocation3], 128, 128, 8
    $region5: #{forward.1} parent=1 // pred_fallthru
      _
    // Predicated region
    $region6: #{forward.1} parent=1 // pred_check
      _
    $region7: #{forward.1} parent=1 // pred_check_branch
      %22 = sbr.rel (0) target = $region9
    $region8: #{forward.1} parent=1 // pred_region
      _
    $region9: #{forward.1} parent=1 // pred_fallthru
      _
    // Predicated region
    $region10: #{forward.1} parent=1 // pred_check
      _
    $region11: #{forward.1} parent=1 // pred_check_branch
      %24 = sbr.rel (0) target = $region13
    $region12: #{forward.1} parent=1 // pred_region
      _
    $region13: #{forward.1} parent=1 // pred_fallthru
      _
    // Predicated region
    $region14: #{forward.1} parent=1 // pred_check
      _
    $region15: #{forward.1} parent=1 // pred_check_branch
      %26 = sbr.rel (0) target = $region17
    $region16: #{forward.1} parent=1 // pred_region
      %27 = dma.done [#allocation3], 4096
    $region17: #{forward.1} parent=1 // pred_fallthru
      _
    %v28 = vld [vmem:[%s2] sm:$0x3]
    %v29 = vld [vmem:[%s2 + $0x8] sm:$0xff]
    %v30 = vld [vmem:[%s1 + $0x70] sm:$0xff]
    %v31 = vlaneseq
    %v32 = vshrl.u32 %v31, 7
    %v33 = vsub.s32 0, %v32
    %v34 = vrot.slane %v28, %v33
    %v35 = vsub.f32 %v34, %v30
    %v36 = vmul.f32 %v35, %v35
    %v37 = vsub.f32 0.0, %v36
    %v38 = vld [vmem:[%s1 + $0x78] sm:$0xff]
    %v39 = vlaneseq
    %v40 = vshrl.u32 %v39, 7
    %v41 = vsub.s32 1, %v40
    %v42 = vrot.slane %v28, %v41
    %v43 = vsub.f32 %v42, %v38
    %v44 = vmul.f32 %v43, %v43
    %v45 = vsub.f32 %v37, %v44
    %v46 = vmul.f32 %v45, 1.442695
    %v47 = vpow.pop %v46
    %v48 = vld [vmem:[#allocation2] sm:$0xff]
    %v49 = vld [vmem:[#allocation2 + $0x8] sm:$0xff]
    %v50 = vld [vmem:[%s1 + $0x30] sm:$0xff]
    %v51 = vld [vmem:[%s1 + $0x38] sm:$0xff]
    %vm52 = vcmask 64512
    %v54 = vsel %vm52, %v48, 0
    %v57 = vsel %vm52, %v49, 0
    %59 = vmatprep.subr.mxu0 0.0
    %60 = vmatpush1.msra.mxu0 0.0
    %61 = vmatprep.subr.mxu0 0.0
    %62 = vmatpush1.msra.mxu0 0.0
    %63 = vmatprep.subr.mxu0 0.0
    %64 = vmatpush1.msra.mxu0 0.0
    %65 = vmatprep.subr.mxu0 0.0
    %66 = vmatpush1.msra.mxu0 0.0
    %67 = vmatprep.subr.mxu0 0.0
    %68 = vmatpush1.msra.mxu0 0.0
    %69 = vmatprep.subr.mxu0 0.0
    %70 = vmatpush1.msra.mxu0 0.0
    %71 = vmatprep.subr.mxu0 0.0
    %72 = vmatpush1.msra.mxu0 0.0
    %73 = vmatprep.subr.mxu0 0.0
    %74 = vmatpush1.msra.mxu0 0.0
    %75 = vmatprep.subr.mxu0 0.0
    %76 = vmatpush1.msra.mxu0 0.0
    %77 = vmatprep.subr.mxu0 0.0
    %78 = vmatpush1.msra.mxu0 0.0
    %79 = vmatprep.subr.mxu0 0.0
    %80 = vmatpush1.msra.mxu0 0.0
    %81 = vmatprep.subr.mxu0 0.0
    %82 = vmatpush1.msra.mxu0 0.0
    %83 = vmatprep.subr.mxu0 0.0
    %84 = vmatpush1.msra.mxu0 0.0
    %85 = vmatprep.subr.mxu0 0.0
    %86 = vmatpush1.msra.mxu0 0.0
    %87 = vmatprep.subr.mxu0 0.0
    %88 = vmatpush1.msra.mxu0 0.0
    %89 = vmatprep.subr.mxu0 0.0
    %90 = vmatpush1.msra.mxu0 %v47
    %91 = vmatprep.subr.mxu0 0.0
    %92 = vmatpush2.msra.mxu0 0.0
    %93 = vmatprep.subr.mxu0 0.0
    %94 = vmatpush2.msra.mxu0 0.0
    %95 = vmatprep.subr.mxu0 0.0
    %96 = vmatpush2.msra.mxu0 0.0
    %97 = vmatprep.subr.mxu0 0.0
    %98 = vmatpush2.msra.mxu0 0.0
    %99 = vmatprep.subr.mxu0 0.0
    %100 = vmatpush2.msra.mxu0 0.0
    %101 = vmatprep.subr.mxu0 0.0
    %102 = vmatpush2.msra.mxu0 0.0
    %103 = vmatprep.subr.mxu0 0.0
    %104 = vmatpush2.msra.mxu0 0.0
    %105 = vmatprep.subr.mxu0 0.0
    %106 = vmatpush2.msra.mxu0 0.0
    %107 = vmatprep.subr.mxu0 0.0
    %108 = vmatpush2.msra.mxu0 0.0
    %109 = vmatprep.subr.mxu0 0.0
    %110 = vmatpush2.msra.mxu0 0.0
    %111 = vmatprep.subr.mxu0 0.0
    %112 = vmatpush2.msra.mxu0 0.0
    %113 = vmatprep.subr.mxu0 0.0
    %114 = vmatpush2.msra.mxu0 0.0
    %115 = vmatprep.subr.mxu0 0.0
    %116 = vmatpush2.msra.mxu0 0.0
    %117 = vmatprep.subr.mxu0 0.0
    %118 = vmatpush2.msra.mxu0 0.0
    %119 = vmatprep.subr.mxu0 0.0
    %120 = vmatpush2.msra.mxu0 0.0
    %121 = vmatprep.subr.mxu0 0.0
    %122 = vmatpush2.msra.mxu0 0.0
    %123 = vmatprep.mubr.f32.mxu0 0.0
    %124 = vmatmul.mubr.f32.gmra.mxu0 %v54
    %v125 = vpop.f32.mrf.mxu0
    %v126 = vadd.f32 %v50, %v125
    %v127 = vpop.f32.mrf.mxu0
    %128 = vmatprep.mubr.f32.mxu0 0.0
    %129 = vmatmul.mubr.f32.gmra.mxu0 %v57
    %v130 = vpop.f32.mrf.mxu0
    %v131 = vadd.f32 %v51, %v130
    %v132 = vpop.f32.mrf.mxu0
    %133 = vdwg.mxu0
    %v134 = vtanh.pop %v126
    %v135 = vtanh.pop %v131
    %v136 = vld [vmem:[#allocation2 + $0x10] sm:$0xff]
    %v137 = vld [vmem:[#allocation2 + $0x18] sm:$0xff]
    %v138 = vld [vmem:[%s1 + $0x40] sm:$0xff]
    %v139 = vld [vmem:[%s1 + $0x48] sm:$0xff]
    %vm140 = vcmask 130048
    %v142 = vsel %vm140, %v136, 0
    %v145 = vsel %vm140, %v137, 0
    %147 = vmatprep.subr.mxu0 0.0
    %148 = vmatpush1.msra.mxu0 0.0
    %149 = vmatprep.subr.mxu0 0.0
    %150 = vmatpush1.msra.mxu0 0.0
    %151 = vmatprep.subr.mxu0 0.0
    %152 = vmatpush1.msra.mxu0 0.0
    %153 = vmatprep.subr.mxu0 0.0
    %154 = vmatpush1.msra.mxu0 0.0
    %155 = vmatprep.subr.mxu0 0.0
    %156 = vmatpush1.msra.mxu0 0.0
    %157 = vmatprep.subr.mxu0 0.0
    %158 = vmatpush1.msra.mxu0 0.0
    %159 = vmatprep.subr.mxu0 0.0
    %160 = vmatpush1.msra.mxu0 0.0
    %161 = vmatprep.subr.mxu0 0.0
    %162 = vmatpush1.msra.mxu0 0.0
    %163 = vmatprep.subr.mxu0 0.0
    %164 = vmatpush1.msra.mxu0 0.0
    %165 = vmatprep.subr.mxu0 0.0
    %166 = vmatpush1.msra.mxu0 0.0
    %167 = vmatprep.subr.mxu0 0.0
    %168 = vmatpush1.msra.mxu0 0.0
    %169 = vmatprep.subr.mxu0 0.0
    %170 = vmatpush1.msra.mxu0 0.0
    %171 = vmatprep.subr.mxu0 0.0
    %172 = vmatpush1.msra.mxu0 0.0
    %173 = vmatprep.subr.mxu0 0.0
    %174 = vmatpush1.msra.mxu0 0.0
    %175 = vmatprep.subr.mxu0 0.0
    %176 = vmatpush1.msra.mxu0 %v135
    %177 = vmatprep.subr.mxu0 0.0
    %178 = vmatpush1.msra.mxu0 %v134
    %179 = vmatprep.subr.mxu0 0.0
    %180 = vmatpush2.msra.mxu0 0.0
    %181 = vmatprep.subr.mxu0 0.0
    %182 = vmatpush2.msra.mxu0 0.0
    %183 = vmatprep.subr.mxu0 0.0
    %184 = vmatpush2.msra.mxu0 0.0
    %185 = vmatprep.subr.mxu0 0.0
    %186 = vmatpush2.msra.mxu0 0.0
    %187 = vmatprep.subr.mxu0 0.0
    %188 = vmatpush2.msra.mxu0 0.0
    %189 = vmatprep.subr.mxu0 0.0
    %190 = vmatpush2.msra.mxu0 0.0
    %191 = vmatprep.subr.mxu0 0.0
    %192 = vmatpush2.msra.mxu0 0.0
    %193 = vmatprep.subr.mxu0 0.0
    %194 = vmatpush2.msra.mxu0 0.0
    %195 = vmatprep.subr.mxu0 0.0
    %196 = vmatpush2.msra.mxu0 0.0
    %197 = vmatprep.subr.mxu0 0.0
    %198 = vmatpush2.msra.mxu0 0.0
    %199 = vmatprep.subr.mxu0 0.0
    %200 = vmatpush2.msra.mxu0 0.0
    %201 = vmatprep.subr.mxu0 0.0
    %202 = vmatpush2.msra.mxu0 0.0
    %203 = vmatprep.subr.mxu0 0.0
    %204 = vmatpush2.msra.mxu0 0.0
    %205 = vmatprep.subr.mxu0 0.0
    %206 = vmatpush2.msra.mxu0 0.0
    %207 = vmatprep.subr.mxu0 0.0
    %208 = vmatpush2.msra.mxu0 0.0
    %209 = vmatprep.subr.mxu0 0.0
    %210 = vmatpush2.msra.mxu0 0.0
    %211 = vmatprep.mubr.f32.mxu0 0.0
    %212 = vmatmul.mubr.f32.gmra.mxu0 %v142
    %v213 = vpop.f32.mrf.mxu0
    %v214 = vadd.f32 %v138, %v213
    %v215 = vpop.f32.mrf.mxu0
    %216 = vmatprep.mubr.f32.mxu0 0.0
    %217 = vmatmul.mubr.f32.gmra.mxu0 %v145
    %v218 = vpop.f32.mrf.mxu0
    %v219 = vadd.f32 %v139, %v218
    %v220 = vpop.f32.mrf.mxu0
    %221 = vdwg.mxu0
    %v222 = vtanh.pop %v214
    %v223 = vtanh.pop %v219
    %v224 = vld [vmem:[#allocation2 + $0x20] sm:$0xff]
    %v225 = vld [vmem:[#allocation2 + $0x28] sm:$0xff]
    %v226 = vld [vmem:[#allocation2 + $0x30] sm:$0xff]
    %v227 = vld [vmem:[#allocation2 + $0x38] sm:$0xff]
    %v228 = vld [vmem:[%s1 + $0x50] sm:$0xff]
    %v229 = vld [vmem:[%s1 + $0x58] sm:$0xff]
    %v230 = vld [vmem:[%s1 + $0x60] sm:$0xff]
    %v231 = vld [vmem:[%s1 + $0x68] sm:$0xff]
    %v233 = vsel %vm140, %v224, 0
    %v236 = vsel %vm140, %v225, 0
    %v239 = vsel %vm140, %v226, 0
    %v242 = vsel %vm140, %v227, 0
    %244 = vmatprep.subr.mxu0 0.0
    %245 = vmatpush1.msra.mxu0 0.0
    %246 = vmatprep.subr.mxu0 0.0
    %247 = vmatpush1.msra.mxu0 0.0
    %248 = vmatprep.subr.mxu0 0.0
    %249 = vmatpush1.msra.mxu0 0.0
    %250 = vmatprep.subr.mxu0 0.0
    %251 = vmatpush1.msra.mxu0 0.0
    %252 = vmatprep.subr.mxu0 0.0
    %253 = vmatpush1.msra.mxu0 0.0
    %254 = vmatprep.subr.mxu0 0.0
    %255 = vmatpush1.msra.mxu0 0.0
    %256 = vmatprep.subr.mxu0 0.0
    %257 = vmatpush1.msra.mxu0 0.0
    %258 = vmatprep.subr.mxu0 0.0
    %259 = vmatpush1.msra.mxu0 0.0
    %260 = vmatprep.subr.mxu0 0.0
    %261 = vmatpush1.msra.mxu0 0.0
    %262 = vmatprep.subr.mxu0 0.0
    %263 = vmatpush1.msra.mxu0 0.0
    %264 = vmatprep.subr.mxu0 0.0
    %265 = vmatpush1.msra.mxu0 0.0
    %266 = vmatprep.subr.mxu0 0.0
    %267 = vmatpush1.msra.mxu0 0.0
    %268 = vmatprep.subr.mxu0 0.0
    %269 = vmatpush1.msra.mxu0 0.0
    %270 = vmatprep.subr.mxu0 0.0
    %271 = vmatpush1.msra.mxu0 0.0
    %272 = vmatprep.subr.mxu0 0.0
    %273 = vmatpush1.msra.mxu0 %v223
    %274 = vmatprep.subr.mxu0 0.0
    %275 = vmatpush1.msra.mxu0 %v222
    %276 = vmatprep.subr.mxu0 0.0
    %277 = vmatpush2.msra.mxu0 0.0
    %278 = vmatprep.subr.mxu0 0.0
    %279 = vmatpush2.msra.mxu0 0.0
    %280 = vmatprep.subr.mxu0 0.0
    %281 = vmatpush2.msra.mxu0 0.0
    %282 = vmatprep.subr.mxu0 0.0
    %283 = vmatpush2.msra.mxu0 0.0
    %284 = vmatprep.subr.mxu0 0.0
    %285 = vmatpush2.msra.mxu0 0.0
    %286 = vmatprep.subr.mxu0 0.0
    %287 = vmatpush2.msra.mxu0 0.0
    %288 = vmatprep.subr.mxu0 0.0
    %289 = vmatpush2.msra.mxu0 0.0
    %290 = vmatprep.subr.mxu0 0.0
    %291 = vmatpush2.msra.mxu0 0.0
    %292 = vmatprep.subr.mxu0 0.0
    %293 = vmatpush2.msra.mxu0 0.0
    %294 = vmatprep.subr.mxu0 0.0
    %295 = vmatpush2.msra.mxu0 0.0
    %296 = vmatprep.subr.mxu0 0.0
    %297 = vmatpush2.msra.mxu0 0.0
    %298 = vmatprep.subr.mxu0 0.0
    %299 = vmatpush2.msra.mxu0 0.0
    %300 = vmatprep.subr.mxu0 0.0
    %301 = vmatpush2.msra.mxu0 0.0
    %302 = vmatprep.subr.mxu0 0.0
    %303 = vmatpush2.msra.mxu0 0.0
    %304 = vmatprep.subr.mxu0 0.0
    %305 = vmatpush2.msra.mxu0 0.0
    %306 = vmatprep.subr.mxu0 0.0
    %307 = vmatpush2.msra.mxu0 0.0
    %308 = vmatprep.mubr.f32.mxu0 0.0
    %309 = vmatmul.mubr.f32.gmra.mxu0 %v233
    %v310 = vpop.f32.mrf.mxu0
    %v311 = vadd.f32 %v228, %v310
    %v312 = vpop.f32.mrf.mxu0
    %313 = vmatprep.mubr.f32.mxu0 0.0
    %314 = vmatmul.mubr.f32.gmra.mxu0 %v236
    %v315 = vpop.f32.mrf.mxu0
    %v316 = vadd.f32 %v229, %v315
    %v317 = vpop.f32.mrf.mxu0
    %318 = vmatprep.mubr.f32.mxu0 0.0
    %319 = vmatmul.mubr.f32.gmra.mxu0 %v239
    %v320 = vpop.f32.mrf.mxu0
    %v321 = vadd.f32 %v230, %v320
    %v322 = vpop.f32.mrf.mxu0
    %323 = vmatprep.mubr.f32.mxu0 0.0
    %324 = vmatmul.mubr.f32.gmra.mxu0 %v242
    %v325 = vpop.f32.mrf.mxu0
    %v326 = vadd.f32 %v231, %v325
    %v327 = vpop.f32.mrf.mxu0
    %328 = vdwg.mxu0
    %v329 = vld [vmem:[%s1 + $0x8] sm:$0x1]
    %v330 = vld [vmem:[%s1 + $0x10] sm:$0xff]
    %v331 = vld [vmem:[%s1 + $0x18] sm:$0xff]
    %v332 = vld [vmem:[%s1 + $0x20] sm:$0xff]
    %v333 = vld [vmem:[%s1 + $0x28] sm:$0xff]
    %v334 = vmul.f32 %v330, %v311
    %v335 = vmul.f32 %v331, %v316
    %v336 = vmul.f32 %v332, %v321
    %v337 = vmul.f32 %v333, %v326
    %v338 = vadd.f32 %v334, %v335
    %v339 = vadd.f32 %v338, %v336
    %v340 = vadd.f32 %v339, %v337
    %v341 = vrot.slane %v340, 4
    %v342 = vadd.f32 %v340, %v341
    %v343 = vrot.slane %v342, 2
    %v344 = vadd.f32 %v342, %v343
    %v345 = vrot.slane %v344, 1
    %v346 = vadd.f32 %v344, %v345
    %v347 = vadd.f32 %v346, %v329
    %v348 = vld [vmem:[#allocation2 + $0x40] sm:$0xff]
    %v349 = vld [vmem:[#allocation2 + $0x48] sm:$0xff]
    %v350 = vld [vmem:[#allocation2 + $0x50] sm:$0xff]
    %v351 = vld [vmem:[#allocation2 + $0x58] sm:$0xff]
    %v352 = vld [vmem:[#allocation2 + $0x60] sm:$0xff]
    %v353 = vld [vmem:[#allocation2 + $0x68] sm:$0x1]
    %v354 = vlaneseq
    %v355 = vshrl.u32 %v354, 7
    %v356 = vsub.s32 0, %v355
    %v357 = vrot.slane %v353, %v356
    %vm358 = vcmask 261120
    %v360 = vsel %vm358, %v348, 0
    %362 = vmatprep.subr.mxu0 0.0
    %363 = vmatpush1.msra.mxu0 0.0
    %364 = vmatprep.subr.mxu0 0.0
    %365 = vmatpush1.msra.mxu0 0.0
    %366 = vmatprep.subr.mxu0 0.0
    %367 = vmatpush1.msra.mxu0 0.0
    %368 = vmatprep.subr.mxu0 0.0
    %369 = vmatpush1.msra.mxu0 0.0
    %370 = vmatprep.subr.mxu0 0.0
    %371 = vmatpush1.msra.mxu0 0.0
    %372 = vmatprep.subr.mxu0 0.0
    %373 = vmatpush1.msra.mxu0 0.0
    %374 = vmatprep.subr.mxu0 0.0
    %375 = vmatpush1.msra.mxu0 0.0
    %376 = vmatprep.subr.mxu0 0.0
    %377 = vmatpush1.msra.mxu0 0.0
    %378 = vmatprep.subr.mxu0 0.0
    %379 = vmatpush1.msra.mxu0 0.0
    %380 = vmatprep.subr.mxu0 0.0
    %381 = vmatpush1.msra.mxu0 0.0
    %382 = vmatprep.subr.mxu0 0.0
    %383 = vmatpush1.msra.mxu0 0.0
    %384 = vmatprep.subr.mxu0 0.0
    %385 = vmatpush1.msra.mxu0 0.0
    %386 = vmatprep.subr.mxu0 0.0
    %387 = vmatpush1.msra.mxu0 %v352
    %388 = vmatprep.subr.mxu0 0.0
    %389 = vmatpush1.msra.mxu0 %v351
    %390 = vmatprep.subr.mxu0 0.0
    %391 = vmatpush1.msra.mxu0 %v350
    %392 = vmatprep.subr.mxu0 0.0
    %393 = vmatpush1.msra.mxu0 %v349
    %394 = vmatprep.subr.mxu0 0.0
    %395 = vmatpush2.msra.mxu0 0.0
    %396 = vmatprep.subr.mxu0 0.0
    %397 = vmatpush2.msra.mxu0 0.0
    %398 = vmatprep.subr.mxu0 0.0
    %399 = vmatpush2.msra.mxu0 0.0
    %400 = vmatprep.subr.mxu0 0.0
    %401 = vmatpush2.msra.mxu0 0.0
    %402 = vmatprep.subr.mxu0 0.0
    %403 = vmatpush2.msra.mxu0 0.0
    %404 = vmatprep.subr.mxu0 0.0
    %405 = vmatpush2.msra.mxu0 0.0
    %406 = vmatprep.subr.mxu0 0.0
    %407 = vmatpush2.msra.mxu0 0.0
    %408 = vmatprep.subr.mxu0 0.0
    %409 = vmatpush2.msra.mxu0 0.0
    %410 = vmatprep.subr.mxu0 0.0
    %411 = vmatpush2.msra.mxu0 0.0
    %412 = vmatprep.subr.mxu0 0.0
    %413 = vmatpush2.msra.mxu0 0.0
    %414 = vmatprep.subr.mxu0 0.0
    %415 = vmatpush2.msra.mxu0 0.0
    %416 = vmatprep.subr.mxu0 0.0
    %417 = vmatpush2.msra.mxu0 0.0
    %418 = vmatprep.subr.mxu0 0.0
    %419 = vmatpush2.msra.mxu0 0.0
    %420 = vmatprep.subr.mxu0 0.0
    %421 = vmatpush2.msra.mxu0 0.0
    %422 = vmatprep.subr.mxu0 0.0
    %423 = vmatpush2.msra.mxu0 0.0
    %424 = vmatprep.subr.mxu0 0.0
    %425 = vmatpush2.msra.mxu0 0.0
    %426 = vmatprep.mubr.f32.mxu0 0.0
    %427 = vmatmul.mubr.f32.gmra.mxu0 %v360
    %v428 = vpop.f32.mrf.mxu0
    %v429 = vadd.f32 %v357, %v428
    %v430 = vpop.f32.mrf.mxu0
    %431 = vdwg.mxu0
    %v432 = vmax.f32 %v429, 0.0
    %v433 = vld [vmem:[#allocation2 + $0x70] sm:$0xff]
    %v434 = vld [vmem:[#allocation2 + $0x78] sm:$0xff]
    %v435 = vld [vmem:[#allocation2 + $0x80] sm:$0xff]
    %v436 = vld [vmem:[#allocation2 + $0x88] sm:$0xff]
    %v437 = vld [vmem:[#allocation2 + $0x90] sm:$0x1]
    %v438 = vlaneseq
    %v439 = vshrl.u32 %v438, 7
    %v440 = vsub.s32 0, %v439
    %v441 = vrot.slane %v437, %v440
    %v443 = vsel %vm358, %v432, 0
    %445 = vmatprep.subr.mxu0 0.0
    %446 = vmatpush1.msra.mxu0 0.0
    %447 = vmatprep.subr.mxu0 0.0
    %448 = vmatpush1.msra.mxu0 0.0
    %449 = vmatprep.subr.mxu0 0.0
    %450 = vmatpush1.msra.mxu0 0.0
    %451 = vmatprep.subr.mxu0 0.0
    %452 = vmatpush1.msra.mxu0 0.0
    %453 = vmatprep.subr.mxu0 0.0
    %454 = vmatpush1.msra.mxu0 0.0
    %455 = vmatprep.subr.mxu0 0.0
    %456 = vmatpush1.msra.mxu0 0.0
    %457 = vmatprep.subr.mxu0 0.0
    %458 = vmatpush1.msra.mxu0 0.0
    %459 = vmatprep.subr.mxu0 0.0
    %460 = vmatpush1.msra.mxu0 0.0
    %461 = vmatprep.subr.mxu0 0.0
    %462 = vmatpush1.msra.mxu0 0.0
    %463 = vmatprep.subr.mxu0 0.0
    %464 = vmatpush1.msra.mxu0 0.0
    %465 = vmatprep.subr.mxu0 0.0
    %466 = vmatpush1.msra.mxu0 0.0
    %467 = vmatprep.subr.mxu0 0.0
    %468 = vmatpush1.msra.mxu0 0.0
    %469 = vmatprep.subr.mxu0 0.0
    %470 = vmatpush1.msra.mxu0 %v436
    %471 = vmatprep.subr.mxu0 0.0
    %472 = vmatpush1.msra.mxu0 %v435
    %473 = vmatprep.subr.mxu0 0.0
    %474 = vmatpush1.msra.mxu0 %v434
    %475 = vmatprep.subr.mxu0 0.0
    %476 = vmatpush1.msra.mxu0 %v433
    %477 = vmatprep.subr.mxu0 0.0
    %478 = vmatpush2.msra.mxu0 0.0
    %479 = vmatprep.subr.mxu0 0.0
    %480 = vmatpush2.msra.mxu0 0.0
    %481 = vmatprep.subr.mxu0 0.0
    %482 = vmatpush2.msra.mxu0 0.0
    %483 = vmatprep.subr.mxu0 0.0
    %484 = vmatpush2.msra.mxu0 0.0
    %485 = vmatprep.subr.mxu0 0.0
    %486 = vmatpush2.msra.mxu0 0.0
    %487 = vmatprep.subr.mxu0 0.0
    %488 = vmatpush2.msra.mxu0 0.0
    %489 = vmatprep.subr.mxu0 0.0
    %490 = vmatpush2.msra.mxu0 0.0
    %491 = vmatprep.subr.mxu0 0.0
    %492 = vmatpush2.msra.mxu0 0.0
    %493 = vmatprep.subr.mxu0 0.0
    %494 = vmatpush2.msra.mxu0 0.0
    %495 = vmatprep.subr.mxu0 0.0
    %496 = vmatpush2.msra.mxu0 0.0
    %497 = vmatprep.subr.mxu0 0.0
    %498 = vmatpush2.msra.mxu0 0.0
    %499 = vmatprep.subr.mxu0 0.0
    %500 = vmatpush2.msra.mxu0 0.0
    %501 = vmatprep.subr.mxu0 0.0
    %502 = vmatpush2.msra.mxu0 0.0
    %503 = vmatprep.subr.mxu0 0.0
    %504 = vmatpush2.msra.mxu0 0.0
    %505 = vmatprep.subr.mxu0 0.0
    %506 = vmatpush2.msra.mxu0 0.0
    %507 = vmatprep.subr.mxu0 0.0
    %508 = vmatpush2.msra.mxu0 0.0
    %509 = vmatprep.mubr.f32.mxu0 0.0
    %510 = vmatmul.mubr.f32.gmra.mxu0 %v443
    %v511 = vpop.f32.mrf.mxu0
    %v512 = vadd.f32 %v441, %v511
    %v513 = vpop.f32.mrf.mxu0
    %514 = vdwg.mxu0
    %v515 = vmax.f32 %v512, 0.0
    %v516 = vld [vmem:[#allocation2 + $0x98] sm:$0xff]
    %v517 = vld [vmem:[#allocation2 + $0xa0] sm:$0xff]
    %v518 = vld [vmem:[#allocation2 + $0xa8] sm:$0x1]
    %v519 = vlaneseq
    %v520 = vshrl.u32 %v519, 7
    %v521 = vsub.s32 0, %v520
    %v522 = vrot.slane %v518, %v521
    %v524 = vsel %vm140, %v515, 0
    %526 = vmatprep.subr.mxu0 0.0
    %527 = vmatpush1.msra.mxu0 0.0
    %528 = vmatprep.subr.mxu0 0.0
    %529 = vmatpush1.msra.mxu0 0.0
    %530 = vmatprep.subr.mxu0 0.0
    %531 = vmatpush1.msra.mxu0 0.0
    %532 = vmatprep.subr.mxu0 0.0
    %533 = vmatpush1.msra.mxu0 0.0
    %534 = vmatprep.subr.mxu0 0.0
    %535 = vmatpush1.msra.mxu0 0.0
    %536 = vmatprep.subr.mxu0 0.0
    %537 = vmatpush1.msra.mxu0 0.0
    %538 = vmatprep.subr.mxu0 0.0
    %539 = vmatpush1.msra.mxu0 0.0
    %540 = vmatprep.subr.mxu0 0.0
    %541 = vmatpush1.msra.mxu0 0.0
    %542 = vmatprep.subr.mxu0 0.0
    %543 = vmatpush1.msra.mxu0 0.0
    %544 = vmatprep.subr.mxu0 0.0
    %545 = vmatpush1.msra.mxu0 0.0
    %546 = vmatprep.subr.mxu0 0.0
    %547 = vmatpush1.msra.mxu0 0.0
    %548 = vmatprep.subr.mxu0 0.0
    %549 = vmatpush1.msra.mxu0 0.0
    %550 = vmatprep.subr.mxu0 0.0
    %551 = vmatpush1.msra.mxu0 0.0
    %552 = vmatprep.subr.mxu0 0.0
    %553 = vmatpush1.msra.mxu0 0.0
    %554 = vmatprep.subr.mxu0 0.0
    %555 = vmatpush1.msra.mxu0 %v517
    %556 = vmatprep.subr.mxu0 0.0
    %557 = vmatpush1.msra.mxu0 %v516
    %558 = vmatprep.subr.mxu0 0.0
    %559 = vmatpush2.msra.mxu0 0.0
    %560 = vmatprep.subr.mxu0 0.0
    %561 = vmatpush2.msra.mxu0 0.0
    %562 = vmatprep.subr.mxu0 0.0
    %563 = vmatpush2.msra.mxu0 0.0
    %564 = vmatprep.subr.mxu0 0.0
    %565 = vmatpush2.msra.mxu0 0.0
    %566 = vmatprep.subr.mxu0 0.0
    %567 = vmatpush2.msra.mxu0 0.0
    %568 = vmatprep.subr.mxu0 0.0
    %569 = vmatpush2.msra.mxu0 0.0
    %570 = vmatprep.subr.mxu0 0.0
    %571 = vmatpush2.msra.mxu0 0.0
    %572 = vmatprep.subr.mxu0 0.0
    %573 = vmatpush2.msra.mxu0 0.0
    %574 = vmatprep.subr.mxu0 0.0
    %575 = vmatpush2.msra.mxu0 0.0
    %576 = vmatprep.subr.mxu0 0.0
    %577 = vmatpush2.msra.mxu0 0.0
    %578 = vmatprep.subr.mxu0 0.0
    %579 = vmatpush2.msra.mxu0 0.0
    %580 = vmatprep.subr.mxu0 0.0
    %581 = vmatpush2.msra.mxu0 0.0
    %582 = vmatprep.subr.mxu0 0.0
    %583 = vmatpush2.msra.mxu0 0.0
    %584 = vmatprep.subr.mxu0 0.0
    %585 = vmatpush2.msra.mxu0 0.0
    %586 = vmatprep.subr.mxu0 0.0
    %587 = vmatpush2.msra.mxu0 0.0
    %588 = vmatprep.subr.mxu0 0.0
    %589 = vmatpush2.msra.mxu0 0.0
    %590 = vmatprep.mubr.f32.mxu0 0.0
    %591 = vmatmul.mubr.f32.gmra.mxu0 %v524
    %v592 = vpop.f32.mrf.mxu0
    %v593 = vadd.f32 %v522, %v592
    %v594 = vpop.f32.mrf.mxu0
    %595 = vdwg.mxu0
    %v596 = vmul.f32 %v593, 0.5
    %v597 = vmul.f32 %v596, 1.442695
    %v598 = vpow.pop %v597
    %600 = vrot.lane.b32.xlu0 %v598, 120
    %v601 = vpop.permute.xlu0 %600
    %v603 = vmul.f32 %v29, %v601
    %v604 = vadd.f32 %v593, %v603
    %v605 = vld [vmem:[#allocation2 + $0xb0] sm:$0xff]
    %v606 = vld [vmem:[#allocation2 + $0xb8] sm:$0x1]
    %v607 = vlaneseq
    %v608 = vshrl.u32 %v607, 7
    %v609 = vsub.s32 0, %v608
    %v610 = vrot.slane %v606, %v609
    %v612 = vsel %vm52, %v604, 0
    %614 = vmatprep.subr.mxu0 0.0
    %615 = vmatpush1.msra.mxu0 0.0
    %616 = vmatprep.subr.mxu0 0.0
    %617 = vmatpush1.msra.mxu0 0.0
    %618 = vmatprep.subr.mxu0 0.0
    %619 = vmatpush1.msra.mxu0 0.0
    %620 = vmatprep.subr.mxu0 0.0
    %621 = vmatpush1.msra.mxu0 0.0
    %622 = vmatprep.subr.mxu0 0.0
    %623 = vmatpush1.msra.mxu0 0.0
    %624 = vmatprep.subr.mxu0 0.0
    %625 = vmatpush1.msra.mxu0 0.0
    %626 = vmatprep.subr.mxu0 0.0
    %627 = vmatpush1.msra.mxu0 0.0
    %628 = vmatprep.subr.mxu0 0.0
    %629 = vmatpush1.msra.mxu0 0.0
    %630 = vmatprep.subr.mxu0 0.0
    %631 = vmatpush1.msra.mxu0 0.0
    %632 = vmatprep.subr.mxu0 0.0
    %633 = vmatpush1.msra.mxu0 0.0
    %634 = vmatprep.subr.mxu0 0.0
    %635 = vmatpush1.msra.mxu0 0.0
    %636 = vmatprep.subr.mxu0 0.0
    %637 = vmatpush1.msra.mxu0 0.0
    %638 = vmatprep.subr.mxu0 0.0
    %639 = vmatpush1.msra.mxu0 0.0
    %640 = vmatprep.subr.mxu0 0.0
    %641 = vmatpush1.msra.mxu0 0.0
    %642 = vmatprep.subr.mxu0 0.0
    %643 = vmatpush1.msra.mxu0 0.0
    %644 = vmatprep.subr.mxu0 0.0
    %645 = vmatpush1.msra.mxu0 %v605
    %646 = vmatprep.subr.mxu0 0.0
    %647 = vmatpush2.msra.mxu0 0.0
    %648 = vmatprep.subr.mxu0 0.0
    %649 = vmatpush2.msra.mxu0 0.0
    %650 = vmatprep.subr.mxu0 0.0
    %651 = vmatpush2.msra.mxu0 0.0
    %652 = vmatprep.subr.mxu0 0.0
    %653 = vmatpush2.msra.mxu0 0.0
    %654 = vmatprep.subr.mxu0 0.0
    %655 = vmatpush2.msra.mxu0 0.0
    %656 = vmatprep.subr.mxu0 0.0
    %657 = vmatpush2.msra.mxu0 0.0
    %658 = vmatprep.subr.mxu0 0.0
    %659 = vmatpush2.msra.mxu0 0.0
    %660 = vmatprep.subr.mxu0 0.0
    %661 = vmatpush2.msra.mxu0 0.0
    %662 = vmatprep.subr.mxu0 0.0
    %663 = vmatpush2.msra.mxu0 0.0
    %664 = vmatprep.subr.mxu0 0.0
    %665 = vmatpush2.msra.mxu0 0.0
    %666 = vmatprep.subr.mxu0 0.0
    %667 = vmatpush2.msra.mxu0 0.0
    %668 = vmatprep.subr.mxu0 0.0
    %669 = vmatpush2.msra.mxu0 0.0
    %670 = vmatprep.subr.mxu0 0.0
    %671 = vmatpush2.msra.mxu0 0.0
    %672 = vmatprep.subr.mxu0 0.0
    %673 = vmatpush2.msra.mxu0 0.0
    %674 = vmatprep.subr.mxu0 0.0
    %675 = vmatpush2.msra.mxu0 0.0
    %676 = vmatprep.subr.mxu0 0.0
    %677 = vmatpush2.msra.mxu0 0.0
    %678 = vmatprep.mubr.f32.mxu0 0.0
    %679 = vmatmul.mubr.f32.gmra.mxu0 %v612
    %v680 = vpop.f32.mrf.mxu0
    %v681 = vadd.f32 %v610, %v680
    %v682 = vpop.f32.mrf.mxu0
    %683 = vdwg.mxu0
    %v684 = vmax.f32 %v681, 0.0
    %v685 = vld [vmem:[#allocation2 + $0xc0] sm:$0xff]
    %v686 = vld [vmem:[#allocation2 + $0xc8] sm:$0xff]
    %v687 = vld [vmem:[#allocation2 + $0xd0] sm:$0x1]
    %v688 = vlaneseq
    %v689 = vshrl.u32 %v688, 7
    %v690 = vsub.s32 0, %v689
    %v691 = vrot.slane %v687, %v690
    %v693 = vsel %vm140, %v684, 0
    %695 = vmatprep.subr.mxu0 0.0
    %696 = vmatpush1.msra.mxu0 0.0
    %697 = vmatprep.subr.mxu0 0.0
    %698 = vmatpush1.msra.mxu0 0.0
    %699 = vmatprep.subr.mxu0 0.0
    %700 = vmatpush1.msra.mxu0 0.0
    %701 = vmatprep.subr.mxu0 0.0
    %702 = vmatpush1.msra.mxu0 0.0
    %703 = vmatprep.subr.mxu0 0.0
    %704 = vmatpush1.msra.mxu0 0.0
    %705 = vmatprep.subr.mxu0 0.0
    %706 = vmatpush1.msra.mxu0 0.0
    %707 = vmatprep.subr.mxu0 0.0
    %708 = vmatpush1.msra.mxu0 0.0
    %709 = vmatprep.subr.mxu0 0.0
    %710 = vmatpush1.msra.mxu0 0.0
    %711 = vmatprep.subr.mxu0 0.0
    %712 = vmatpush1.msra.mxu0 0.0
    %713 = vmatprep.subr.mxu0 0.0
    %714 = vmatpush1.msra.mxu0 0.0
    %715 = vmatprep.subr.mxu0 0.0
    %716 = vmatpush1.msra.mxu0 0.0
    %717 = vmatprep.subr.mxu0 0.0
    %718 = vmatpush1.msra.mxu0 0.0
    %719 = vmatprep.subr.mxu0 0.0
    %720 = vmatpush1.msra.mxu0 0.0
    %721 = vmatprep.subr.mxu0 0.0
    %722 = vmatpush1.msra.mxu0 0.0
    %723 = vmatprep.subr.mxu0 0.0
    %724 = vmatpush1.msra.mxu0 %v686
    %725 = vmatprep.subr.mxu0 0.0
    %726 = vmatpush1.msra.mxu0 %v685
    %727 = vmatprep.subr.mxu0 0.0
    %728 = vmatpush2.msra.mxu0 0.0
    %729 = vmatprep.subr.mxu0 0.0
    %730 = vmatpush2.msra.mxu0 0.0
    %731 = vmatprep.subr.mxu0 0.0
    %732 = vmatpush2.msra.mxu0 0.0
    %733 = vmatprep.subr.mxu0 0.0
    %734 = vmatpush2.msra.mxu0 0.0
    %735 = vmatprep.subr.mxu0 0.0
    %736 = vmatpush2.msra.mxu0 0.0
    %737 = vmatprep.subr.mxu0 0.0
    %738 = vmatpush2.msra.mxu0 0.0
    %739 = vmatprep.subr.mxu0 0.0
    %740 = vmatpush2.msra.mxu0 0.0
    %741 = vmatprep.subr.mxu0 0.0
    %742 = vmatpush2.msra.mxu0 0.0
    %743 = vmatprep.subr.mxu0 0.0
    %744 = vmatpush2.msra.mxu0 0.0
    %745 = vmatprep.subr.mxu0 0.0
    %746 = vmatpush2.msra.mxu0 0.0
    %747 = vmatprep.subr.mxu0 0.0
    %748 = vmatpush2.msra.mxu0 0.0
    %749 = vmatprep.subr.mxu0 0.0
    %750 = vmatpush2.msra.mxu0 0.0
    %751 = vmatprep.subr.mxu0 0.0
    %752 = vmatpush2.msra.mxu0 0.0
    %753 = vmatprep.subr.mxu0 0.0
    %754 = vmatpush2.msra.mxu0 0.0
    %755 = vmatprep.subr.mxu0 0.0
    %756 = vmatpush2.msra.mxu0 0.0
    %757 = vmatprep.subr.mxu0 0.0
    %758 = vmatpush2.msra.mxu0 0.0
    %759 = vmatprep.mubr.f32.mxu0 0.0
    %760 = vmatmul.mubr.f32.gmra.mxu0 %v693
    %v761 = vpop.f32.mrf.mxu0
    %v762 = vadd.f32 %v691, %v761
    %v763 = vpop.f32.mrf.mxu0
    %764 = vdwg.mxu0
    %v765 = vmax.f32 %v762, 0.0
    %v766 = vld [vmem:[#allocation2 + $0xd8] sm:$0xff]
    %v767 = vld [vmem:[#allocation2 + $0xe0] sm:$0xff]
    %v768 = vld [vmem:[#allocation2 + $0xe8] sm:$0xff]
    %v769 = vld [vmem:[#allocation2 + $0xf0] sm:$0xff]
    %v770 = vld [vmem:[#allocation2 + $0xf8] sm:$0x1]
    %v771 = vlaneseq
    %v772 = vshrl.u32 %v771, 7
    %v773 = vsub.s32 0, %v772
    %v774 = vrot.slane %v770, %v773
    %v776 = vsel %vm358, %v765, 0
    %778 = vmatprep.subr.mxu0 0.0
    %779 = vmatpush1.msra.mxu0 0.0
    %780 = vmatprep.subr.mxu0 0.0
    %781 = vmatpush1.msra.mxu0 0.0
    %782 = vmatprep.subr.mxu0 0.0
    %783 = vmatpush1.msra.mxu0 0.0
    %784 = vmatprep.subr.mxu0 0.0
    %785 = vmatpush1.msra.mxu0 0.0
    %786 = vmatprep.subr.mxu0 0.0
    %787 = vmatpush1.msra.mxu0 0.0
    %788 = vmatprep.subr.mxu0 0.0
    %789 = vmatpush1.msra.mxu0 0.0
    %790 = vmatprep.subr.mxu0 0.0
    %791 = vmatpush1.msra.mxu0 0.0
    %792 = vmatprep.subr.mxu0 0.0
    %793 = vmatpush1.msra.mxu0 0.0
    %794 = vmatprep.subr.mxu0 0.0
    %795 = vmatpush1.msra.mxu0 0.0
    %796 = vmatprep.subr.mxu0 0.0
    %797 = vmatpush1.msra.mxu0 0.0
    %798 = vmatprep.subr.mxu0 0.0
    %799 = vmatpush1.msra.mxu0 0.0
    %800 = vmatprep.subr.mxu0 0.0
    %801 = vmatpush1.msra.mxu0 0.0
    %802 = vmatprep.subr.mxu0 0.0
    %803 = vmatpush1.msra.mxu0 %v769
    %804 = vmatprep.subr.mxu0 0.0
    %805 = vmatpush1.msra.mxu0 %v768
    %806 = vmatprep.subr.mxu0 0.0
    %807 = vmatpush1.msra.mxu0 %v767
    %808 = vmatprep.subr.mxu0 0.0
    %809 = vmatpush1.msra.mxu0 %v766
    %810 = vmatprep.subr.mxu0 0.0
    %811 = vmatpush2.msra.mxu0 0.0
    %812 = vmatprep.subr.mxu0 0.0
    %813 = vmatpush2.msra.mxu0 0.0
    %814 = vmatprep.subr.mxu0 0.0
    %815 = vmatpush2.msra.mxu0 0.0
    %816 = vmatprep.subr.mxu0 0.0
    %817 = vmatpush2.msra.mxu0 0.0
    %818 = vmatprep.subr.mxu0 0.0
    %819 = vmatpush2.msra.mxu0 0.0
    %820 = vmatprep.subr.mxu0 0.0
    %821 = vmatpush2.msra.mxu0 0.0
    %822 = vmatprep.subr.mxu0 0.0
    %823 = vmatpush2.msra.mxu0 0.0
    %824 = vmatprep.subr.mxu0 0.0
    %825 = vmatpush2.msra.mxu0 0.0
    %826 = vmatprep.subr.mxu0 0.0
    %827 = vmatpush2.msra.mxu0 0.0
    %828 = vmatprep.subr.mxu0 0.0
    %829 = vmatpush2.msra.mxu0 0.0
    %830 = vmatprep.subr.mxu0 0.0
    %831 = vmatpush2.msra.mxu0 0.0
    %832 = vmatprep.subr.mxu0 0.0
    %833 = vmatpush2.msra.mxu0 0.0
    %834 = vmatprep.subr.mxu0 0.0
    %835 = vmatpush2.msra.mxu0 0.0
    %836 = vmatprep.subr.mxu0 0.0
    %837 = vmatpush2.msra.mxu0 0.0
    %838 = vmatprep.subr.mxu0 0.0
    %839 = vmatpush2.msra.mxu0 0.0
    %840 = vmatprep.subr.mxu0 0.0
    %841 = vmatpush2.msra.mxu0 0.0
    %842 = vmatprep.mubr.f32.mxu0 0.0
    %843 = vmatmul.mubr.f32.gmra.mxu0 %v776
    %v844 = vpop.f32.mrf.mxu0
    %v845 = vadd.f32 %v774, %v844
    %v846 = vpop.f32.mrf.mxu0
    %847 = vdwg.mxu0
    %v849 = vsel %vm358, %v845, 0
    %851 = vmatprep.subr.mxu0 0.0
    %852 = vmatpush1.msra.mxu0 0.0
    %853 = vmatprep.subr.mxu0 0.0
    %854 = vmatpush1.msra.mxu0 0.0
    %855 = vmatprep.subr.mxu0 0.0
    %856 = vmatpush1.msra.mxu0 0.0
    %857 = vmatprep.subr.mxu0 0.0
    %858 = vmatpush1.msra.mxu0 0.0
    %859 = vmatprep.subr.mxu0 0.0
    %860 = vmatpush1.msra.mxu0 0.0
    %861 = vmatprep.subr.mxu0 0.0
    %862 = vmatpush1.msra.mxu0 0.0
    %863 = vmatprep.subr.mxu0 0.0
    %864 = vmatpush1.msra.mxu0 0.0
    %865 = vmatprep.subr.mxu0 0.0
    %866 = vmatpush1.msra.mxu0 0.0
    %867 = vmatprep.subr.mxu0 0.0
    %868 = vmatpush1.msra.mxu0 0.0
    %869 = vmatprep.subr.mxu0 0.0
    %870 = vmatpush1.msra.mxu0 0.0
    %871 = vmatprep.subr.mxu0 0.0
    %872 = vmatpush1.msra.mxu0 0.0
    %873 = vmatprep.subr.mxu0 0.0
    %874 = vmatpush1.msra.mxu0 0.0
    %875 = vmatprep.subr.mxu0 0.0
    %876 = vmatpush1.msra.mxu0 %v326
    %877 = vmatprep.subr.mxu0 0.0
    %878 = vmatpush1.msra.mxu0 %v321
    %879 = vmatprep.subr.mxu0 0.0
    %880 = vmatpush1.msra.mxu0 %v316
    %881 = vmatprep.subr.mxu0 0.0
    %882 = vmatpush1.msra.mxu0 %v311
    %883 = vmatprep.subr.mxu0 0.0
    %884 = vmatpush2.msra.mxu0 0.0
    %885 = vmatprep.subr.mxu0 0.0
    %886 = vmatpush2.msra.mxu0 0.0
    %887 = vmatprep.subr.mxu0 0.0
    %888 = vmatpush2.msra.mxu0 0.0
    %889 = vmatprep.subr.mxu0 0.0
    %890 = vmatpush2.msra.mxu0 0.0
    %891 = vmatprep.subr.mxu0 0.0
    %892 = vmatpush2.msra.mxu0 0.0
    %893 = vmatprep.subr.mxu0 0.0
    %894 = vmatpush2.msra.mxu0 0.0
    %895 = vmatprep.subr.mxu0 0.0
    %896 = vmatpush2.msra.mxu0 0.0
    %897 = vmatprep.subr.mxu0 0.0
    %898 = vmatpush2.msra.mxu0 0.0
    %899 = vmatprep.subr.mxu0 0.0
    %900 = vmatpush2.msra.mxu0 0.0
    %901 = vmatprep.subr.mxu0 0.0
    %902 = vmatpush2.msra.mxu0 0.0
    %903 = vmatprep.subr.mxu0 0.0
    %904 = vmatpush2.msra.mxu0 0.0
    %905 = vmatprep.subr.mxu0 0.0
    %906 = vmatpush2.msra.mxu0 0.0
    %907 = vmatprep.subr.mxu0 0.0
    %908 = vmatpush2.msra.mxu0 0.0
    %909 = vmatprep.subr.mxu0 0.0
    %910 = vmatpush2.msra.mxu0 0.0
    %911 = vmatprep.subr.mxu0 0.0
    %912 = vmatpush2.msra.mxu0 0.0
    %913 = vmatprep.subr.mxu0 0.0
    %914 = vmatpush2.msra.mxu0 0.0
    %915 = vmatprep.mubr.f32.mxu0 0.0
    %916 = vmatmul.mubr.f32.gmra.mxu0 %v849
    %v917 = vpop.f32.mrf.mxu0
    %v918 = vadd.f32 0.0, %v917
    %v919 = vpop.f32.mrf.mxu0
    %920 = vdwg.mxu0
    %v921 = vld [vmem:[%s1] sm:$0xff]
    %v922 = vmul.f32 %v918, %v921
    %v923 = vrot.slane %v922, 4
    %v924 = vadd.f32 %v922, %v923
    %v925 = vrot.slane %v924, 2
    %v926 = vadd.f32 %v924, %v925
    %v927 = vrot.slane %v926, 1
    %v928 = vadd.f32 %v926, %v927
    %v929 = vadd.f32 %v928, %v329
    %930 = vst [vmem:[%s3] sm:$0xff] 0.0
    %931 = vst [vmem:[%s3 + $0x8] sm:$0xff] 0.0
    %932 = vst [vmem:[%s3] sm:$0x1] %v347
    %933 = vst [vmem:[%s3 + $0x1] sm:$0x1] %v929
    %934 = vst.msk [vmem:[%s3 + $0x8] sm:$0xff] %vm140, %v593
    // Predicated region
    $region18: #{forward.1} parent=1 // pred_check
      _
    $region19: #{forward.1} parent=1 // pred_check_branch
      %936 = sbr.rel (0) target = $region21
    $region20: #{forward.1} parent=1 // pred_region
      _
    $region21: #{forward.1} parent=1 // pred_fallthru
      _
    // Predicated region
    $region22: #{forward.1} parent=1 // pred_check
      _
    $region23: #{forward.1} parent=1 // pred_check_branch
      %938 = sbr.rel (0) target = $region25
    $region24: #{forward.1} parent=1 // pred_region
      _
    $region25: #{forward.1} parent=1 // pred_fallthru
      _
    %939 = vsyncpa [#allocation3], 1

</llo_original>
